<compile_context>
chip_gen: v7x
topology: tpu7x:2x2x1
jax: 0.10.0
libtpu: 0.0.40
codegen_flags: <defaults>
</compile_context>

<pallas_src>
import functools
from math import sqrt

import jax
import jax.numpy as jnp
from jax.experimental import pallas as pl
from jax.experimental.pallas import tpu as pltpu


def _round_up(a: int, b: int) -> int:
    return (a + b - 1) // b * b


def _padded_vmem_bytes(rows: int, cols: int, itemsize: int = 4) -> int:
    # VMEM tiles are laid out on (8, 128)-padded vregs.
    return _round_up(max(rows, 1), 8) * _round_up(max(cols, 1), 128) * itemsize


def _inr_last_kernel(x_ref, w_ref, b_ref, o_ref):
    # x_ref: (TM, dim_in), w_ref: (dim_in, dim_out) [pre-transposed],
    # b_ref: (1, dim_out) [out_bias already folded], o_ref: (TM, dim_out)
    acc = jnp.dot(x_ref[...], w_ref[...], preferred_element_type=jnp.float32)
    o_ref[...] = (acc + b_ref[...]).astype(o_ref.dtype)


@functools.partial(jax.jit, static_argnames=("out_bias",))
def inr_layer_last(x, weight, bias, out_bias=0.0):
    """y = x @ weight.T + bias + out_bias, matching nn.Linear semantics.

    Args:
      x:      (..., dim_in) float32
      weight: (dim_out, dim_in) float32  (PyTorch nn.Linear layout)
      bias:   (dim_out,) float32
      out_bias: python float (static)
    Returns:
      (..., dim_out) float32
    """
    dim_out, dim_in = weight.shape
    lead_shape = x.shape[:-1]
    n = 1
    for d in lead_shape:
        n *= d

    x2d = x.reshape(n, dim_in)

    # One-time, tiny: canonical MXU feed (contract x's lane dim with w's
    # sublane dim) instead of contracting both lane dims in-kernel.
    w_t = weight.T  # (dim_in, dim_out)

    # Fold the static scalar out_bias into the bias vector (free on host).
    b2d = (bias + jnp.float32(out_bias)).reshape(1, dim_out)

    # Row tile: big enough that the ~0.35 us per-grid-step overhead is
    # amortized against HBM time, small enough that the double-buffered,
    # lane-padded footprint stays well inside v7x's 64 MiB VMEM.
    TM_MAX = 8192
    TM = min(TM_MAX, _round_up(n, 8))

    grid = (pl.cdiv(n, TM),)  # ragged last block; no padding / slicing.

    # VMEM budget with real (lane-padded) tile sizes: 2 buffers each for the
    # streaming x and out tiles, plus resident weight/bias (counted x2 to be
    # safe), plus slack for compiler temporaries.
    tile_bytes = 2 * (_padded_vmem_bytes(TM, dim_in) + _padded_vmem_bytes(TM, dim_out))
    static_bytes = 2 * (_padded_vmem_bytes(dim_in, dim_out) + _padded_vmem_bytes(1, dim_out))
    vmem_limit = int(min(tile_bytes + static_bytes + (8 << 20), 48 << 20))

    cost = pl.CostEstimate(
        flops=2 * n * dim_in * dim_out,
        transcendentals=0,
        bytes_accessed=4 * (n * dim_in + dim_in * dim_out + dim_out + n * dim_out),
    )

    out2d = pl.pallas_call(
        _inr_last_kernel,
        out_shape=jax.ShapeDtypeStruct((n, dim_out), x.dtype),
        grid_spec=pl.GridSpec(
            grid=grid,
            in_specs=[
                pl.BlockSpec((TM, dim_in), lambda i: (i, 0)),
                pl.BlockSpec((dim_in, dim_out), lambda i: (0, 0)),
                pl.BlockSpec((1, dim_out), lambda i: (0, 0)),
            ],
            out_specs=pl.BlockSpec((TM, dim_out), lambda i: (i, 0)),
        ),
        compiler_params=pltpu.CompilerParams(
            dimension_semantics=("parallel",),
            vmem_limit_bytes=vmem_limit,
        ),
        cost_estimate=cost,
    )(x2d, w_t, b2d)

    return out2d.reshape(*lead_shape, dim_out)


def init_params(key, dim_in, dim_out):
    """Deterministic init matching nn.Linear's U(-1/sqrt(dim_in), 1/sqrt(dim_in))."""
    kw, kb = jax.random.split(key)
    bound = 1.0 / sqrt(dim_in)
    weight = jax.random.uniform(kw, (dim_out, dim_in), jnp.float32, -bound, bound)
    bias = jax.random.uniform(kb, (dim_out,), jnp.float32, -bound, bound)
    return weight, bias


if __name__ == "__main__":
    key = jax.random.PRNGKey(0)
    kx, kp = jax.random.split(key)

    batch, seq, dim_in, dim_out = 2, 8, 32, 16
    out_bias = 0.5

    x = jax.random.normal(kx, (batch, seq, dim_in), dtype=jnp.float32)
    weight, bias = init_params(kp, dim_in, dim_out)

    y = inr_layer_last(x, weight, bias, out_bias=out_bias)
    y = jax.block_until_ready(y)

    # reference check against plain JAX (same math as nn.Linear + out_bias)
    y_ref = x @ weight.T + bias + out_bias
    assert y.shape == (batch, seq, dim_out)
    assert jnp.allclose(y, y_ref, atol=1e-5, rtol=1e-5)

    # ragged N (not a multiple of TM) exercises the partial-last-block path
    x2 = jax.random.normal(kx, (3, 1000, dim_in), dtype=jnp.float32)
    y2 = jax.block_until_ready(inr_layer_last(x2, weight, bias, out_bias=out_bias))
    y2_ref = x2 @ weight.T + bias + out_bias
    assert y2.shape == (3, 1000, dim_out)
    assert jnp.allclose(y2, y2_ref, atol=1e-5, rtol=1e-5)

    # larger N (> TM) exercises the multi-step grid with a ragged tail
    x3 = jax.random.normal(kx, (5, 2000, dim_in), dtype=jnp.float32)
    y3 = jax.block_until_ready(inr_layer_last(x3, weight, bias, out_bias=out_bias))
    y3_ref = x3 @ weight.T + bias + out_bias
    assert jnp.allclose(y3, y3_ref, atol=1e-5, rtol=1e-5)

    print("KERNEL_OK")
</pallas_src>

<mosaic_0001>
module attributes {stable_mosaic.version = 11 : i64} {
  func.func @_inr_last_kernel(%arg0: i32, %arg1: memref<16x32xf32, #tpu.memory_space<vmem>>, %arg2: memref<32x16xf32, #tpu.memory_space<vmem>>, %arg3: memref<1x16xf32, #tpu.memory_space<vmem>>, %arg4: memref<16x16xf32, #tpu.memory_space<vmem>>) attributes {dimension_semantics = [#tpu.dimension_semantics<parallel>], iteration_bounds = array<i64: 1>, scalar_prefetch = 0 : i64, scratch_operands = 0 : i64, tpu.core_type = #tpu.core_type<tc>, window_params = [{transform_indices = @transform_0, window_bounds = array<i64: 16, 32>}, {pipeline_mode = #tpu.pipeline_mode<synchronous>, transform_indices = @transform_1, window_bounds = array<i64: 32, 16>}, {pipeline_mode = #tpu.pipeline_mode<synchronous>, transform_indices = @transform_2, window_bounds = array<i64: 1, 16>}, {transform_indices = @transform_3, window_bounds = array<i64: 16, 16>}]} {
    %c0 = arith.constant 0 : index
    %c0_0 = arith.constant 0 : index
    %0 = vector.load %arg1[%c0, %c0_0] : memref<16x32xf32, #tpu.memory_space<vmem>>, vector<16x32xf32>
    %c0_1 = arith.constant 0 : index
    %c0_2 = arith.constant 0 : index
    %1 = vector.load %arg2[%c0_1, %c0_2] : memref<32x16xf32, #tpu.memory_space<vmem>>, vector<32x16xf32>
    %cst = arith.constant dense<0.000000e+00> : vector<16x16xf32>
    %2 = tpu.matmul %0, %1, %cst {dimension_numbers = #tpu.dot_dimension_numbers<[1], [0], [0], [1], [0, 0, 1, 1], [], []>} : vector<16x32xf32>, vector<32x16xf32>, vector<16x16xf32> -> vector<16x16xf32>
    %c0_3 = arith.constant 0 : index
    %c0_4 = arith.constant 0 : index
    %3 = vector.load %arg3[%c0_3, %c0_4] : memref<1x16xf32, #tpu.memory_space<vmem>>, vector<1x16xf32>
    %4 = vector.broadcast %3 : vector<1x16xf32> to vector<16x16xf32>
    %5 = arith.addf %2, %4 : vector<16x16xf32>
    %c0_5 = arith.constant 0 : index
    %c0_6 = arith.constant 0 : index
    %6 = vector.load %arg4[%c0_5, %c0_6] : memref<16x16xf32, #tpu.memory_space<vmem>>, vector<16x16xf32>
    tpu.vector_store %arg4[%c0_5, %c0_6], %5 {strides = array<i32>} : memref<16x16xf32, #tpu.memory_space<vmem>>, vector<16x16xf32>,
    return
  }
  func.func @transform_0(%arg0: i32) -> (i32, i32) {
    %c0_i32 = arith.constant 0 : i32
    %c0_i32_0 = arith.constant 0 : i32
    return %arg0, %c0_i32 : i32, i32
  }
  func.func @transform_1(%arg0: i32) -> (i32, i32) {
    %c0_i32 = arith.constant 0 : i32
    %c0_i32_0 = arith.constant 0 : i32
    %c0_i32_1 = arith.constant 0 : i32
    return %c0_i32, %c0_i32_0 : i32, i32
  }
  func.func @transform_2(%arg0: i32) -> (i32, i32) {
    %c0_i32 = arith.constant 0 : i32
    %c0_i32_0 = arith.constant 0 : i32
    %c0_i32_1 = arith.constant 0 : i32
    return %c0_i32, %c0_i32_0 : i32, i32
  }
  func.func @transform_3(%arg0: i32) -> (i32, i32) {
    %c0_i32 = arith.constant 0 : i32
    %c0_i32_0 = arith.constant 0 : i32
    return %arg0, %c0_i32 : i32, i32
  }
}

</mosaic_0001>

<llo_original>
// kernel: inr_layer_last.1
$region0: #{inr_layer_last.1}
  #allocation0 [shape = 'u32[]', space=smem, size = 0x4, offset = 0x4, fixed_abs, tag = 'smem constant byte address 0x4 - core index']
  #allocation1 [shape = 'u32[144,128]{1,0:T(1,128)}', space=vmem, size = 0x12000, scoped, tag = 'internal scratch']
  %s0 = inlined_call_operand.vmem [shape: f32[16,32], index: 0, kind: input, shape index: {}]
  %s1 = inlined_call_operand.vmem [shape: f32[32,16], index: 1, kind: input, shape index: {}]
  %s2 = inlined_call_operand.vmem [shape: f32[1,16], index: 2, kind: input, shape index: {}]
  %s3 = inlined_call_operand.hbm [shape: f32[16,16], index: 3, kind: output, shape index: {}]
  %s4 = sld [smem:[#allocation0]]
  $region22: #{inr_layer_last.1} parent=0
    _
  %s6 = ssub.s32 1, %s4
  %s7 = scalar_select 0, %s6, %s4
  $region1: #{inr_layer_last.1} parent=0
    #allocation2 [shape = 'u8[8192]{0}', space=vmem, size = 0x2000, scoped, tag = 'output window, operand 0, single buffered']
    #allocation3 [shape = 's32[1]{0}', space=sflag, size = 0x4, scoped, tag = 'scoped memory for inr_layer_last.1']
    %8 = vsyncpa [#allocation3], 0
    // Predicated region
    $region2: #{inr_layer_last.1} parent=1 // pred_check
      _
    $region3: #{inr_layer_last.1} parent=1 // pred_check_branch
      %10 = sbr.rel (0) target = $region5
    $region4: #{inr_layer_last.1} parent=1 // pred_region
      _
    $region5: #{inr_layer_last.1} parent=1 // pred_fallthru
      _
    // Predicated region
    $region6: #{inr_layer_last.1} parent=1 // pred_check
      _
    $region7: #{inr_layer_last.1} parent=1 // pred_check_branch
      %12 = sbr.rel (0) target = $region9
    $region8: #{inr_layer_last.1} parent=1 // pred_region
      _
    $region9: #{inr_layer_last.1} parent=1 // pred_fallthru
      _
    // Predicated region
    $region10: #{inr_layer_last.1} parent=1 // pred_check
      _
    $region11: #{inr_layer_last.1} parent=1 // pred_check_branch
      %14 = sbr.rel (0) target = $region13
    $region12: #{inr_layer_last.1} parent=1 // pred_region
      _
    $region13: #{inr_layer_last.1} parent=1 // pred_fallthru
      _
    %v15 = vld [vmem:[%s0] sm:$0xff]
    %v16 = vld [vmem:[%s0 + $0x8] sm:$0xff]
    %v17 = vld [vmem:[%s1] sm:$0xff]
    %v18 = vld [vmem:[%s1 + $0x8] sm:$0xff]
    %v19 = vld [vmem:[%s1 + $0x10] sm:$0xff]
    %v20 = vld [vmem:[%s1 + $0x18] sm:$0xff]
    %v21 = vld [vmem:[%s2] sm:$0x1]
    %v23 = vlaneseq
    %v24 = vshrl.u32 %v23, 7
    %v25 = vsub.s32 0, %v24
    %v26 = vrot.slane %v21, %v25
    %vm28 = vcmask 261120
    %v30 = vsel %vm28, %v15, 0
    %v33 = vsel %vm28, %v16, 0
    %35 = vmatprep.subr.mxu0 0.0
    %36 = vmatpush1.msra.mxu0 %v17
    %37 = vmatprep.subr.mxu0 0.0
    %38 = vmatpush1.msra.mxu0 %v18
    %39 = vmatprep.subr.mxu0 0.0
    %40 = vmatpush1.msra.mxu0 %v19
    %41 = vmatprep.subr.mxu0 0.0
    %42 = vmatpush1.msra.mxu0 %v20
    %43 = vmatprep.subr.mxu0 0.0
    %44 = vmatpush1.msra.mxu0 0.0
    %45 = vmatprep.subr.mxu0 0.0
    %46 = vmatpush1.msra.mxu0 0.0
    %47 = vmatprep.subr.mxu0 0.0
    %48 = vmatpush1.msra.mxu0 0.0
    %49 = vmatprep.subr.mxu0 0.0
    %50 = vmatpush1.msra.mxu0 0.0
    %51 = vmatprep.subr.mxu0 0.0
    %52 = vmatpush1.msra.mxu0 0.0
    %53 = vmatprep.subr.mxu0 0.0
    %54 = vmatpush1.msra.mxu0 0.0
    %55 = vmatprep.subr.mxu0 0.0
    %56 = vmatpush1.msra.mxu0 0.0
    %57 = vmatprep.subr.mxu0 0.0
    %58 = vmatpush1.msra.mxu0 0.0
    %59 = vmatprep.subr.mxu0 0.0
    %60 = vmatpush1.msra.mxu0 0.0
    %61 = vmatprep.subr.mxu0 0.0
    %62 = vmatpush1.msra.mxu0 0.0
    %63 = vmatprep.subr.mxu0 0.0
    %64 = vmatpush1.msra.mxu0 0.0
    %65 = vmatprep.subr.mxu0 0.0
    %66 = vmatpush1.msra.mxu0 0.0
    %67 = vmatprep.subr.mxu0 0.0
    %68 = vmatpush1.msra.mxu0 0.0
    %69 = vmatprep.subr.mxu0 0.0
    %70 = vmatpush1.msra.mxu0 0.0
    %71 = vmatprep.subr.mxu0 0.0
    %72 = vmatpush1.msra.mxu0 0.0
    %73 = vmatprep.subr.mxu0 0.0
    %74 = vmatpush1.msra.mxu0 0.0
    %75 = vmatprep.subr.mxu0 0.0
    %76 = vmatpush1.msra.mxu0 0.0
    %77 = vmatprep.subr.mxu0 0.0
    %78 = vmatpush1.msra.mxu0 0.0
    %79 = vmatprep.subr.mxu0 0.0
    %80 = vmatpush1.msra.mxu0 0.0
    %81 = vmatprep.subr.mxu0 0.0
    %82 = vmatpush1.msra.mxu0 0.0
    %83 = vmatprep.subr.mxu0 0.0
    %84 = vmatpush1.msra.mxu0 0.0
    %85 = vmatprep.subr.mxu0 0.0
    %86 = vmatpush1.msra.mxu0 0.0
    %87 = vmatprep.subr.mxu0 0.0
    %88 = vmatpush1.msra.mxu0 0.0
    %89 = vmatprep.subr.mxu0 0.0
    %90 = vmatpush1.msra.mxu0 0.0
    %91 = vmatprep.subr.mxu0 0.0
    %92 = vmatpush1.msra.mxu0 0.0
    %93 = vmatprep.subr.mxu0 0.0
    %94 = vmatpush1.msra.mxu0 0.0
    %95 = vmatprep.subr.mxu0 0.0
    %96 = vmatpush1.msra.mxu0 0.0
    %97 = vmatprep.subr.mxu0 0.0
    %98 = vmatpush1.msra.mxu0 0.0
    %99 = vmatprep.mubr.f32.mxu0 0.0
    %100 = vmatmul.mubr.f32.gmra.mrb[0].mxu0 %v30
    %v101 = vpop.f32.mrb[0].mxu0
    %v102 = vadd.f32 %v26, %v101
    %v103 = vpop.f32.mrb[0].mxu0
    %104 = vmatprep.mubr.f32.mxu0 0.0
    %105 = vmatmul.mubr.f32.gmra.mrb[0].mxu0 %v33
    %v106 = vpop.f32.mrb[0].mxu0
    %v107 = vadd.f32 %v26, %v106
    %v108 = vpop.f32.mrb[0].mxu0
    %109 = vdwg.mxu0
    %vm110 = vcmask 130048
    %111 = vst.msk [vmem:[#allocation2] sm:$0xff] %vm110, %v102
    %112 = vst.msk [vmem:[#allocation2 + $0x8] sm:$0xff] %vm110, %v107
    // Predicated region
    $region14: #{inr_layer_last.1} parent=1 // pred_check
      _
    $region15: #{inr_layer_last.1} parent=1 // pred_check_branch
      %114 = sbr.rel (0) target = $region17
    $region16: #{inr_layer_last.1} parent=1 // pred_region
      %s116 = ssub.s32 256, 256
      %117 = vsyncadd [#allocation3], %s116
      %s118 = sshll.u32 [#allocation2], 4
      %s119 = int_to_ptr.vmem [resolvable:$true] %s118
      %124 = dma.vmem_to_hbm [thread:$0]  %s119, 256, %s3, [#allocation3], 128, 128, 8
    $region17: #{inr_layer_last.1} parent=1 // pred_fallthru
      _
    // Predicated region
    $region18: #{inr_layer_last.1} parent=1 // pred_check
      _
    $region19: #{inr_layer_last.1} parent=1 // pred_check_branch
      %126 = sbr.rel (0) target = $region21
    $region20: #{inr_layer_last.1} parent=1 // pred_region
      %127 = dma.done [#allocation3], 256
    $region21: #{inr_layer_last.1} parent=1 // pred_fallthru
      _
    %128 = vsyncpa [#allocation3], 1

</llo_original>
